<compile_context>
chip_gen: v6e
topology: v6e:2x2x1
jax: 0.10.0
libtpu: 0.0.40
codegen_flags: <defaults>
</compile_context>

<pallas_src>
import functools
import math

import jax
import jax.numpy as jnp
from jax.experimental import pallas as pl
from jax.experimental.pallas import tpu as pltpu

EPS = 1e-5
LANE = 128      # lane width: last dim of every VMEM block is padded to this
SUBLANE = 8     # f32 sublane granularity (halo offset is aligned to this)


def _round_up(n: int, m: int) -> int:
    return ((n + m - 1) // m) * m


def _pad_axis(a, axis, target):
    cur = a.shape[axis]
    if cur == target:
        return a
    widths = [(0, 0)] * a.ndim
    widths[axis] = (0, target - cur)
    return jnp.pad(a, widths)          # zero padding


# ----------------------------------------------------------------------------
# Pallas kernel: ONE ConvNeXt block applied to ONE batch tile per grid step.
# ----------------------------------------------------------------------------
def _convnext_block_kernel(
    x_ref,      # (Bt, L, Cp)   input activations (read only at block 0)
    dw_w_ref,   # (1, K, Cp)    depthwise conv weight, tap-major
    dw_b_ref,   # (1, 1, Cp)    depthwise conv bias
    ln_g_ref,   # (1, 1, Cp)    LayerNorm gamma (zero in padded lanes)
    ln_b_ref,   # (1, 1, Cp)    LayerNorm beta
    w_in_ref,   # (1, Cp, Hp)   pointwise_conv1d_in  as a (C -> H) matmul
    b_in_ref,   # (1, 1, Hp)
    w_out_ref,  # (1, Hp, Cp)   pointwise_conv1d_out as a (H -> C) matmul (scale folded)
    b_out_ref,  # (1, 1, Cp)    bias (scale folded)
    o_ref,      # (Bt, L, Cp)   running activation / final output (resident over blocks)
    xp_ref,     # (Bt, L + 2*halo, Cp) persistent VMEM halo scratch
    *,
    kernel_size: int,
    pad: int,
    halo: int,
    c_real: int,
    matmul_dtype,
    eps: float,
):
    blk = pl.program_id(1)
    bt, seq_len, cp = x_ref.shape
    m = bt * seq_len
    inv_sqrt2 = 1.0 / math.sqrt(2.0)

    @pl.when(blk == 0)
    def _init():
        # Running activation starts as the input; halo rows of the depthwise
        # scratch are zeroed once (they are never written afterwards).
        o_ref[...] = x_ref[...]
        xp_ref[...] = jnp.zeros(xp_ref.shape, xp_ref.dtype)

    x3 = o_ref[...].astype(jnp.float32)                 # (Bt, L, Cp)
    residual = x3.reshape(m, cp)

    # ---- depthwise conv1d (groups = C, 'same' zero padding) ------------------
    # Aligned store into the halo'd scratch, then K shifted views.
    xp_ref[:, halo:halo + seq_len, :] = x3
    xp = xp_ref[...]                                    # (Bt, L + 2*halo, Cp)
    dw = dw_w_ref[...].astype(jnp.float32)              # (1, K, Cp)
    base = halo - pad
    y3 = xp[:, base:base + seq_len, :] * dw[:, 0:1, :]
    for t in range(1, kernel_size):
        off = base + t
        y3 = y3 + xp[:, off:off + seq_len, :] * dw[:, t:t + 1, :]
    y3 = y3 + dw_b_ref[...].astype(jnp.float32)
    y = y3.reshape(m, cp)

    # ---- LayerNorm over the (real) feature axis ------------------------------
    # Padded lanes of y are exactly zero, so the plain sum / c_real is the
    # correct mean; the variance is masked to the real channels.
    mean = jnp.sum(y, axis=-1, keepdims=True) * (1.0 / c_real)
    d = y - mean
    if cp != c_real:
        lane_idx = jax.lax.broadcasted_iota(jnp.int32, (1, cp), 1)
        d_masked = jnp.where(lane_idx < c_real, d, 0.0)
    else:
        d_masked = d
    var = jnp.sum(d_masked * d_masked, axis=-1, keepdims=True) * (1.0 / c_real)
    yn = d * jax.lax.rsqrt(var + eps)
    yn = yn * ln_g_ref[0].astype(jnp.float32) + ln_b_ref[0].astype(jnp.float32)

    # ---- pointwise conv in (C -> H) + exact-erf GELU (matches nn.GELU) -------
    h = jnp.dot(yn.astype(matmul_dtype), w_in_ref[0].astype(matmul_dtype),
                preferred_element_type=jnp.float32)
    h = h + b_in_ref[0].astype(jnp.float32)
    h = 0.5 * h * (1.0 + jax.lax.erf(h * inv_sqrt2))

    # ---- pointwise conv out (H -> C); per-feature scale already folded in ----
    o = jnp.dot(h.astype(matmul_dtype), w_out_ref[0].astype(matmul_dtype),
                preferred_element_type=jnp.float32)
    o = o + b_out_ref[0].astype(jnp.float32)

    o_ref[...] = (residual + o).reshape(bt, seq_len, cp).astype(o_ref.dtype)


# ----------------------------------------------------------------------------
# Wrappers
# ----------------------------------------------------------------------------
def stacked_convnext_block1d_nlc(x_nlc, params, *, matmul_dtype=jnp.float32,
                                 batch_tile=1):
    """Channels-last (Pallas-native) entry point: x_nlc is (B, length, num_features)."""
    dw_w, dw_b, ln_g, ln_b, w_in, b_in, w_out, b_out, scale = params
    B, L, C = x_nlc.shape
    NB, K, _ = dw_w.shape
    H = w_in.shape[-1]
    assert K % 2 == 1, "only odd kernel_size is supported (as in the module)"
    assert B % batch_tile == 0

    pad = K // 2
    halo = _round_up(pad, SUBLANE)      # sublane-aligned halo on each side
    Cp = _round_up(C, LANE)             # lane-dense feature axis
    Hp = _round_up(H, LANE)             # lane-dense bottleneck axis

    # Fold the per-feature output scale into the second pointwise conv (exact).
    w_out = w_out * scale               # (NB, H, C) * (NB, 1, C)
    b_out = b_out * scale               # (NB, 1, C)

    # Zero-pad feature / bottleneck axes (exact; padded gammas are zero so
    # padded output lanes stay identically zero through every block).
    x_p = _pad_axis(x_nlc.astype(jnp.float32), 2, Cp)
    dw_w_p = _pad_axis(dw_w, 2, Cp)
    dw_b_p = _pad_axis(dw_b, 2, Cp)
    ln_g_p = _pad_axis(ln_g, 2, Cp)
    ln_b_p = _pad_axis(ln_b, 2, Cp)
    w_in_p = _pad_axis(_pad_axis(w_in, 1, Cp), 2, Hp)
    b_in_p = _pad_axis(b_in, 2, Hp)
    w_out_p = _pad_axis(_pad_axis(w_out, 1, Hp), 2, Cp)
    b_out_p = _pad_axis(b_out, 2, Cp)

    kernel = functools.partial(
        _convnext_block_kernel,
        kernel_size=K, pad=pad, halo=halo, c_real=C,
        matmul_dtype=matmul_dtype, eps=EPS)

    grid = (B // batch_tile, NB)

    def act_spec():
        # activation block: index depends only on the (parallel) batch axis,
        # so it stays resident across the block axis.
        return pl.BlockSpec((batch_tile, L, Cp), lambda b, n: (b, 0, 0))

    def wspec(shape):
        # per-block weights: streamed along the (arbitrary) block axis so only
        # one block's weights are resident / double-buffered at a time.
        return pl.BlockSpec((1,) + shape, lambda b, n: (n, 0, 0))

    out = pl.pallas_call(
        kernel,
        out_shape=jax.ShapeDtypeStruct((B, L, Cp), jnp.float32),
        grid=grid,
        in_specs=[
            act_spec(),
            wspec((K, Cp)),
            wspec((1, Cp)),
            wspec((1, Cp)),
            wspec((1, Cp)),
            wspec((Cp, Hp)),
            wspec((1, Hp)),
            wspec((Hp, Cp)),
            wspec((1, Cp)),
        ],
        out_specs=act_spec(),
        scratch_shapes=[
            pltpu.VMEM((batch_tile, L + 2 * halo, Cp), jnp.float32),
        ],
        compiler_params=pltpu.CompilerParams(
            dimension_semantics=("parallel", "arbitrary"),
            vmem_limit_bytes=48 * 1024 * 1024,
        ),
    )(x_p, dw_w_p, dw_b_p, ln_g_p, ln_b_p, w_in_p, b_in_p, w_out_p, b_out_p)

    return out[:, :, :C]


def stacked_convnext_block1d(x_ncl, params, **kwargs):
    """(batch, num_features, length) API matching the PyTorch module.

    NOTE: in a real pipeline keep activations channels-last and call
    stacked_convnext_block1d_nlc directly; these two transposes exist only to
    match the torch NCL signature and cost an extra HBM pass each.
    """
    x_nlc = jnp.transpose(x_ncl, (0, 2, 1))
    out = stacked_convnext_block1d_nlc(x_nlc, params, **kwargs)
    return jnp.transpose(out, (0, 2, 1))


# ----------------------------------------------------------------------------
# Pure-JAX reference (same math, no Pallas) for the correctness check
# ----------------------------------------------------------------------------
def reference(x_bcl, params):
    dw_w, dw_b, ln_g, ln_b, w_in, b_in, w_out, b_out, scale = params
    NB, K, C = dw_w.shape
    pad = K // 2
    x = jnp.transpose(x_bcl, (0, 2, 1)).astype(jnp.float32)  # (B, L, C)
    L = x.shape[1]
    for blk in range(NB):
        residual = x
        xp = jnp.pad(x, ((0, 0), (pad, pad), (0, 0)))
        y = jnp.zeros_like(x)
        for t in range(K):
            y = y + xp[:, t:t + L, :] * dw_w[blk, t][None, None, :]
        y = y + dw_b[blk][None]
        mean = jnp.mean(y, axis=-1, keepdims=True)
        var = jnp.mean(jnp.square(y - mean), axis=-1, keepdims=True)
        y = (y - mean) / jnp.sqrt(var + EPS) * ln_g[blk][None] + ln_b[blk][None]
        h = jnp.einsum("blc,ch->blh", y, w_in[blk]) + b_in[blk][None]
        h = 0.5 * h * (1.0 + jax.lax.erf(h / jnp.sqrt(2.0)))
        o = jnp.einsum("blh,hc->blc", h, w_out[blk]) + b_out[blk][None]
        x = residual + scale[blk][None] * o
    return jnp.transpose(x, (0, 2, 1))


# ----------------------------------------------------------------------------
# Parameter construction (deterministic, synthetic).
# Layouts relative to the PyTorch module:
#   dw_w  = depthwise_conv1d.weight[:, 0, :].T      -> (K, C)  (tap-major)
#   w_in  = pointwise_conv1d_in.weight[:, :, 0].T   -> (C, H)
#   w_out = pointwise_conv1d_out.weight[:, :, 0].T  -> (H, C)
# stacked along a leading num_blocks axis.
# ----------------------------------------------------------------------------
def make_params(key, num_features, bottleneck_channels, kernel_size, num_blocks):
    C, H, K, NB = num_features, bottleneck_channels, kernel_size, num_blocks
    keys = jax.random.split(key, 6)
    dw_w = 0.2 * jax.random.normal(keys[0], (NB, K, C), jnp.float32)
    dw_b = 0.1 * jax.random.normal(keys[1], (NB, 1, C), jnp.float32)
    ln_g = jnp.ones((NB, 1, C), jnp.float32)          # LayerNorm init: gamma=1
    ln_b = jnp.zeros((NB, 1, C), jnp.float32)         # LayerNorm init: beta=0
    w_in = 0.2 * jax.random.normal(keys[2], (NB, C, H), jnp.float32)
    b_in = 0.1 * jax.random.normal(keys[3], (NB, 1, H), jnp.float32)
    w_out = 0.2 * jax.random.normal(keys[4], (NB, H, C), jnp.float32)
    b_out = 0.1 * jax.random.normal(keys[5], (NB, 1, C), jnp.float32)
    scale = jnp.full((NB, 1, C), 1.0 / NB, jnp.float32)  # scale = 1/num_blocks
    return (dw_w, dw_b, ln_g, ln_b, w_in, b_in, w_out, b_out, scale)


if __name__ == "__main__":
    # Small shapes consistent with the module's forward:
    # input (batch_size, num_features, length)
    batch, num_features, length = 2, 8, 16
    bottleneck_channels, kernel_size, num_blocks = 16, 7, 4

    key = jax.random.PRNGKey(0)
    k_x, k_p = jax.random.split(key)
    x = jax.random.normal(k_x, (batch, num_features, length), jnp.float32)
    params = make_params(
        k_p, num_features, bottleneck_channels, kernel_size, num_blocks
    )

    ref = jax.block_until_ready(reference(x, params))

    # f32 MXU path (bit-for-bit-ish against the reference).
    out = jax.block_until_ready(stacked_convnext_block1d(x, params))
    assert out.shape == x.shape
    err = jnp.max(jnp.abs(out - ref))
    assert jnp.allclose(out, ref, rtol=2e-4, atol=2e-4), f"f32 max abs err {err}"

    # bf16 MXU operands with f32 accumulation (perf path; looser tolerance).
    out_bf16 = jax.block_until_ready(
        stacked_convnext_block1d(x, params, matmul_dtype=jnp.bfloat16)
    )
    err_bf16 = jnp.max(jnp.abs(out_bf16 - ref))
    assert jnp.allclose(out_bf16, ref, rtol=0.15, atol=0.15), (
        f"bf16 max abs err {err_bf16}"
    )

    print("KERNEL_OK")
</pallas_src>

<mosaic_0001>
module attributes {stable_mosaic.version = 11 : i64} {
  func.func @_convnext_block_kernel(%arg0: i32, %arg1: i32, %arg2: memref<1x16x128xf32, #tpu.memory_space<vmem>>, %arg3: memref<1x7x128xf32, #tpu.memory_space<vmem>>, %arg4: memref<1x1x128xf32, #tpu.memory_space<vmem>>, %arg5: memref<1x1x128xf32, #tpu.memory_space<vmem>>, %arg6: memref<1x1x128xf32, #tpu.memory_space<vmem>>, %arg7: memref<1x128x128xf32, #tpu.memory_space<vmem>>, %arg8: memref<1x1x128xf32, #tpu.memory_space<vmem>>, %arg9: memref<1x128x128xf32, #tpu.memory_space<vmem>>, %arg10: memref<1x1x128xf32, #tpu.memory_space<vmem>>, %arg11: memref<1x16x128xf32, #tpu.memory_space<vmem>>, %arg12: memref<1x32x128xf32, #tpu.memory_space<vmem>>) attributes {dimension_semantics = [#tpu.dimension_semantics<parallel>, #tpu.dimension_semantics<arbitrary>], iteration_bounds = array<i64: 2, 4>, scalar_prefetch = 0 : i64, scratch_operands = 1 : i64, tpu.core_type = #tpu.core_type<tc>, window_params = [{transform_indices = @transform_0, window_bounds = array<i64: 1, 16, 128>}, {transform_indices = @transform_1, window_bounds = array<i64: 1, 7, 128>}, {transform_indices = @transform_2, window_bounds = array<i64: 1, 1, 128>}, {transform_indices = @transform_3, window_bounds = array<i64: 1, 1, 128>}, {transform_indices = @transform_4, window_bounds = array<i64: 1, 1, 128>}, {transform_indices = @transform_5, window_bounds = array<i64: 1, 128, 128>}, {transform_indices = @transform_6, window_bounds = array<i64: 1, 1, 128>}, {transform_indices = @transform_7, window_bounds = array<i64: 1, 128, 128>}, {transform_indices = @transform_8, window_bounds = array<i64: 1, 1, 128>}, {transform_indices = @transform_9, window_bounds = array<i64: 1, 16, 128>}]} {
    %c0_i32 = arith.constant 0 : i32
    %0 = arith.cmpi eq, %arg1, %c0_i32 : i32
    %1 = arith.extui %0 : i1 to i32
    %c0_i32_0 = arith.constant 0 : i32
    %2 = arith.cmpi ne, %1, %c0_i32_0 : i32
    scf.if %2 {
      %c0_45 = arith.constant 0 : index
      %c0_46 = arith.constant 0 : index
      %c0_47 = arith.constant 0 : index
      %102 = vector.load %arg2[%c0_45, %c0_46, %c0_47] : memref<1x16x128xf32, #tpu.memory_space<vmem>>, vector<1x16x128xf32>
      %c0_48 = arith.constant 0 : index
      %c0_49 = arith.constant 0 : index
      %c0_50 = arith.constant 0 : index
      %103 = vector.load %arg11[%c0_48, %c0_49, %c0_50] : memref<1x16x128xf32, #tpu.memory_space<vmem>>, vector<1x16x128xf32>
      tpu.vector_store %arg11[%c0_48, %c0_49, %c0_50], %102 {strides = array<i32>} : memref<1x16x128xf32, #tpu.memory_space<vmem>>, vector<1x16x128xf32>,
      %cst_51 = arith.constant 0.000000e+00 : f32
      %104 = vector.broadcast %cst_51 : f32 to vector<1x32x128xf32>
      %c0_52 = arith.constant 0 : index
      %c0_53 = arith.constant 0 : index
      %c0_54 = arith.constant 0 : index
      %105 = vector.load %arg12[%c0_52, %c0_53, %c0_54] : memref<1x32x128xf32, #tpu.memory_space<vmem>>, vector<1x32x128xf32>
      tpu.vector_store %arg12[%c0_52, %c0_53, %c0_54], %104 {strides = array<i32>} : memref<1x32x128xf32, #tpu.memory_space<vmem>>, vector<1x32x128xf32>,
    } else {
    }
    %c0 = arith.constant 0 : index
    %c0_1 = arith.constant 0 : index
    %c0_2 = arith.constant 0 : index
    %3 = vector.load %arg11[%c0, %c0_1, %c0_2] : memref<1x16x128xf32, #tpu.memory_space<vmem>>, vector<1x16x128xf32>
    %4 = vector.shape_cast %3 : vector<1x16x128xf32> to vector<16x128xf32>
    %c0_3 = arith.constant 0 : index
    %c8 = arith.constant 8 : index
    %c0_4 = arith.constant 0 : index
    %5 = vector.load %arg12[%c0_3, %c8, %c0_4] : memref<1x32x128xf32, #tpu.memory_space<vmem>>, vector<1x16x128xf32>
    tpu.vector_store %arg12[%c0_3, %c8, %c0_4], %3 {strides = array<i32>} : memref<1x32x128xf32, #tpu.memory_space<vmem>>, vector<1x16x128xf32>,
    %c0_5 = arith.constant 0 : index
    %c0_6 = arith.constant 0 : index
    %c0_7 = arith.constant 0 : index
    %6 = vector.load %arg12[%c0_5, %c0_6, %c0_7] : memref<1x32x128xf32, #tpu.memory_space<vmem>>, vector<1x32x128xf32>
    %c0_8 = arith.constant 0 : index
    %c0_9 = arith.constant 0 : index
    %c0_10 = arith.constant 0 : index
    %7 = vector.load %arg3[%c0_8, %c0_9, %c0_10] : memref<1x7x128xf32, #tpu.memory_space<vmem>>, vector<1x7x128xf32>
    %8 = vector.extract_strided_slice %6 {offsets = [0, 5, 0], sizes = [1, 16, 128], strides = [1, 1, 1]} : vector<1x32x128xf32> to vector<1x16x128xf32>
    %9 = vector.extract_strided_slice %7 {offsets = [0, 0, 0], sizes = [1, 1, 128], strides = [1, 1, 1]} : vector<1x7x128xf32> to vector<1x1x128xf32>
    %10 = vector.broadcast %9 : vector<1x1x128xf32> to vector<1x16x128xf32>
    %11 = arith.mulf %8, %10 : vector<1x16x128xf32>
    %12 = vector.extract_strided_slice %6 {offsets = [0, 6, 0], sizes = [1, 16, 128], strides = [1, 1, 1]} : vector<1x32x128xf32> to vector<1x16x128xf32>
    %13 = vector.extract_strided_slice %7 {offsets = [0, 1, 0], sizes = [1, 1, 128], strides = [1, 1, 1]} : vector<1x7x128xf32> to vector<1x1x128xf32>
    %14 = vector.broadcast %13 : vector<1x1x128xf32> to vector<1x16x128xf32>
    %15 = arith.mulf %12, %14 : vector<1x16x128xf32>
    %16 = arith.addf %11, %15 : vector<1x16x128xf32>
    %17 = vector.extract_strided_slice %6 {offsets = [0, 7, 0], sizes = [1, 16, 128], strides = [1, 1, 1]} : vector<1x32x128xf32> to vector<1x16x128xf32>
    %18 = vector.extract_strided_slice %7 {offsets = [0, 2, 0], sizes = [1, 1, 128], strides = [1, 1, 1]} : vector<1x7x128xf32> to vector<1x1x128xf32>
    %19 = vector.broadcast %18 : vector<1x1x128xf32> to vector<1x16x128xf32>
    %20 = arith.mulf %17, %19 : vector<1x16x128xf32>
    %21 = arith.addf %16, %20 : vector<1x16x128xf32>
    %22 = vector.extract_strided_slice %6 {offsets = [0, 8, 0], sizes = [1, 16, 128], strides = [1, 1, 1]} : vector<1x32x128xf32> to vector<1x16x128xf32>
    %23 = vector.extract_strided_slice %7 {offsets = [0, 3, 0], sizes = [1, 1, 128], strides = [1, 1, 1]} : vector<1x7x128xf32> to vector<1x1x128xf32>
    %24 = vector.broadcast %23 : vector<1x1x128xf32> to vector<1x16x128xf32>
    %25 = arith.mulf %22, %24 : vector<1x16x128xf32>
    %26 = arith.addf %21, %25 : vector<1x16x128xf32>
    %27 = vector.extract_strided_slice %6 {offsets = [0, 9, 0], sizes = [1, 16, 128], strides = [1, 1, 1]} : vector<1x32x128xf32> to vector<1x16x128xf32>
    %28 = vector.extract_strided_slice %7 {offsets = [0, 4, 0], sizes = [1, 1, 128], strides = [1, 1, 1]} : vector<1x7x128xf32> to vector<1x1x128xf32>
    %29 = vector.broadcast %28 : vector<1x1x128xf32> to vector<1x16x128xf32>
    %30 = arith.mulf %27, %29 : vector<1x16x128xf32>
    %31 = arith.addf %26, %30 : vector<1x16x128xf32>
    %32 = vector.extract_strided_slice %6 {offsets = [0, 10, 0], sizes = [1, 16, 128], strides = [1, 1, 1]} : vector<1x32x128xf32> to vector<1x16x128xf32>
    %33 = vector.extract_strided_slice %7 {offsets = [0, 5, 0], sizes = [1, 1, 128], strides = [1, 1, 1]} : vector<1x7x128xf32> to vector<1x1x128xf32>
    %34 = vector.broadcast %33 : vector<1x1x128xf32> to vector<1x16x128xf32>
    %35 = arith.mulf %32, %34 : vector<1x16x128xf32>
    %36 = arith.addf %31, %35 : vector<1x16x128xf32>
    %37 = vector.extract_strided_slice %6 {offsets = [0, 11, 0], sizes = [1, 16, 128], strides = [1, 1, 1]} : vector<1x32x128xf32> to vector<1x16x128xf32>
    %38 = vector.extract_strided_slice %7 {offsets = [0, 6, 0], sizes = [1, 1, 128], strides = [1, 1, 1]} : vector<1x7x128xf32> to vector<1x1x128xf32>
    %39 = vector.broadcast %38 : vector<1x1x128xf32> to vector<1x16x128xf32>
    %40 = arith.mulf %37, %39 : vector<1x16x128xf32>
    %41 = arith.addf %36, %40 : vector<1x16x128xf32>
    %c0_11 = arith.constant 0 : index
    %c0_12 = arith.constant 0 : index
    %c0_13 = arith.constant 0 : index
    %42 = vector.load %arg4[%c0_11, %c0_12, %c0_13] : memref<1x1x128xf32, #tpu.memory_space<vmem>>, vector<1x1x128xf32>
    %43 = vector.broadcast %42 : vector<1x1x128xf32> to vector<1x16x128xf32>
    %44 = arith.addf %41, %43 : vector<1x16x128xf32>
    %45 = vector.shape_cast %44 : vector<1x16x128xf32> to vector<16x128xf32>
    %cst = arith.constant dense<0.000000e+00> : vector<16xf32>
    %46 = vector.multi_reduction <add>, %45, %cst [1] : vector<16x128xf32> to vector<16xf32>
    %47 = vector.shape_cast %46 : vector<16xf32> to vector<16x1xf32>
    %cst_14 = arith.constant 1.250000e-01 : f32
    %48 = vector.broadcast %cst_14 : f32 to vector<16x1xf32>
    %49 = arith.mulf %47, %48 : vector<16x1xf32>
    %50 = vector.broadcast %49 : vector<16x1xf32> to vector<16x128xf32>
    %51 = arith.subf %45, %50 : vector<16x128xf32>
    %52 = tpu.iota {dimensions = array<i32: 1>} : vector<1x128xi32>
    %c8_i32 = arith.constant 8 : i32
    %53 = vector.broadcast %c8_i32 : i32 to vector<1x128xi32>
    %54 = arith.cmpi slt, %52, %53 : vector<1x128xi32>
    %cst_15 = arith.constant 0.000000e+00 : f32
    %55 = vector.shape_cast %54 : vector<1x128xi1> to vector<1x128xi1>
    %56 = vector.broadcast %55 : vector<1x128xi1> to vector<16x128xi1>
    %57 = vector.broadcast %cst_15 : f32 to vector<16x128xf32>
    %58 = arith.select %56, %51, %57 : vector<16x128xi1>, vector<16x128xf32>
    %59 = arith.mulf %58, %58 : vector<16x128xf32>
    %cst_16 = arith.constant dense<0.000000e+00> : vector<16xf32>
    %60 = vector.multi_reduction <add>, %59, %cst_16 [1] : vector<16x128xf32> to vector<16xf32>
    %61 = vector.shape_cast %60 : vector<16xf32> to vector<16x1xf32>
    %cst_17 = arith.constant 1.250000e-01 : f32
    %62 = vector.broadcast %cst_17 : f32 to vector<16x1xf32>
    %63 = arith.mulf %61, %62 : vector<16x1xf32>
    %cst_18 = arith.constant 9.99999974E-6 : f32
    %64 = vector.broadcast %cst_18 : f32 to vector<16x1xf32>
    %65 = arith.addf %63, %64 : vector<16x1xf32>
    %66 = math.rsqrt %65 : vector<16x1xf32>
    %67 = vector.broadcast %66 : vector<16x1xf32> to vector<16x128xf32>
    %68 = arith.mulf %51, %67 : vector<16x128xf32>
    %c0_19 = arith.constant 0 : index
    %c0_20 = arith.constant 0 : index
    %c0_21 = arith.constant 0 : index
    %69 = vector.load %arg5[%c0_19, %c0_20, %c0_21] : memref<1x1x128xf32, #tpu.memory_space<vmem>>, vector<1x1x128xf32>
    %70 = vector.shape_cast %69 : vector<1x1x128xf32> to vector<1x128xf32>
    %71 = vector.broadcast %70 : vector<1x128xf32> to vector<16x128xf32>
    %72 = arith.mulf %68, %71 : vector<16x128xf32>
    %c0_22 = arith.constant 0 : index
    %c0_23 = arith.constant 0 : index
    %c0_24 = arith.constant 0 : index
    %73 = vector.load %arg6[%c0_22, %c0_23, %c0_24] : memref<1x1x128xf32, #tpu.memory_space<vmem>>, vector<1x1x128xf32>
    %74 = vector.shape_cast %73 : vector<1x1x128xf32> to vector<1x128xf32>
    %75 = vector.broadcast %74 : vector<1x128xf32> to vector<16x128xf32>
    %76 = arith.addf %72, %75 : vector<16x128xf32>
    %c0_25 = arith.constant 0 : index
    %c0_26 = arith.constant 0 : index
    %c0_27 = arith.constant 0 : index
    %77 = vector.load %arg7[%c0_25, %c0_26, %c0_27] : memref<1x128x128xf32, #tpu.memory_space<vmem>>, vector<1x128x128xf32>
    %78 = vector.shape_cast %77 : vector<1x128x128xf32> to vector<128x128xf32>
    %cst_28 = arith.constant dense<0.000000e+00> : vector<16x128xf32>
    %79 = tpu.matmul %76, %78, %cst_28 {dimension_numbers = #tpu.dot_dimension_numbers<[1], [0], [0], [1], [0, 0, 1, 1], [], []>} : vector<16x128xf32>, vector<128x128xf32>, vector<16x128xf32> -> vector<16x128xf32>
    %c0_29 = arith.constant 0 : index
    %c0_30 = arith.constant 0 : index
    %c0_31 = arith.constant 0 : index
    %80 = vector.load %arg8[%c0_29, %c0_30, %c0_31] : memref<1x1x128xf32, #tpu.memory_space<vmem>>, vector<1x1x128xf32>
    %81 = vector.shape_cast %80 : vector<1x1x128xf32> to vector<1x128xf32>
    %82 = vector.broadcast %81 : vector<1x128xf32> to vector<16x128xf32>
    %83 = arith.addf %79, %82 : vector<16x128xf32>
    %cst_32 = arith.constant 5.000000e-01 : f32
    %84 = vector.broadcast %cst_32 : f32 to vector<16x128xf32>
    %85 = arith.mulf %84, %83 : vector<16x128xf32>
    %cst_33 = arith.constant 0.707106769 : f32
    %86 = vector.broadcast %cst_33 : f32 to vector<16x128xf32>
    %87 = arith.mulf %83, %86 : vector<16x128xf32>
    %88 = math.erf %87 : vector<16x128xf32>
    %cst_34 = arith.constant 1.000000e+00 : f32
    %89 = vector.broadcast %cst_34 : f32 to vector<16x128xf32>
    %90 = arith.addf %89, %88 : vector<16x128xf32>
    %91 = arith.mulf %85, %90 : vector<16x128xf32>
    %c0_35 = arith.constant 0 : index
    %c0_36 = arith.constant 0 : index
    %c0_37 = arith.constant 0 : index
    %92 = vector.load %arg9[%c0_35, %c0_36, %c0_37] : memref<1x128x128xf32, #tpu.memory_space<vmem>>, vector<1x128x128xf32>
    %93 = vector.shape_cast %92 : vector<1x128x128xf32> to vector<128x128xf32>
    %cst_38 = arith.constant dense<0.000000e+00> : vector<16x128xf32>
    %94 = tpu.matmul %91, %93, %cst_38 {dimension_numbers = #tpu.dot_dimension_numbers<[1], [0], [0], [1], [0, 0, 1, 1], [], []>} : vector<16x128xf32>, vector<128x128xf32>, vector<16x128xf32> -> vector<16x128xf32>
    %c0_39 = arith.constant 0 : index
    %c0_40 = arith.constant 0 : index
    %c0_41 = arith.constant 0 : index
    %95 = vector.load %arg10[%c0_39, %c0_40, %c0_41] : memref<1x1x128xf32, #tpu.memory_space<vmem>>, vector<1x1x128xf32>
    %96 = vector.shape_cast %95 : vector<1x1x128xf32> to vector<1x128xf32>
    %97 = vector.broadcast %96 : vector<1x128xf32> to vector<16x128xf32>
    %98 = arith.addf %94, %97 : vector<16x128xf32>
    %99 = arith.addf %4, %98 : vector<16x128xf32>
    %100 = vector.shape_cast %99 : vector<16x128xf32> to vector<1x16x128xf32>
    %c0_42 = arith.constant 0 : index
    %c0_43 = arith.constant 0 : index
    %c0_44 = arith.constant 0 : index
    %101 = vector.load %arg11[%c0_42, %c0_43, %c0_44] : memref<1x16x128xf32, #tpu.memory_space<vmem>>, vector<1x16x128xf32>
    tpu.vector_store %arg11[%c0_42, %c0_43, %c0_44], %100 {strides = array<i32>} : memref<1x16x128xf32, #tpu.memory_space<vmem>>, vector<1x16x128xf32>,
    return
  }
  func.func @transform_0(%arg0: i32, %arg1: i32) -> (i32, i32, i32) {
    %c0_i32 = arith.constant 0 : i32
    %c0_i32_0 = arith.constant 0 : i32
    %c0_i32_1 = arith.constant 0 : i32
    return %arg0, %c0_i32, %c0_i32_0 : i32, i32, i32
  }
  func.func @transform_1(%arg0: i32, %arg1: i32) -> (i32, i32, i32) {
    %c0_i32 = arith.constant 0 : i32
    %c0_i32_0 = arith.constant 0 : i32
    %c0_i32_1 = arith.constant 0 : i32
    return %arg1, %c0_i32, %c0_i32_0 : i32, i32, i32
  }
  func.func @transform_2(%arg0: i32, %arg1: i32) -> (i32, i32, i32) {
    %c0_i32 = arith.constant 0 : i32
    %c0_i32_0 = arith.constant 0 : i32
    %c0_i32_1 = arith.constant 0 : i32
    return %arg1, %c0_i32, %c0_i32_0 : i32, i32, i32
  }
  func.func @transform_3(%arg0: i32, %arg1: i32) -> (i32, i32, i32) {
    %c0_i32 = arith.constant 0 : i32
    %c0_i32_0 = arith.constant 0 : i32
    %c0_i32_1 = arith.constant 0 : i32
    return %arg1, %c0_i32, %c0_i32_0 : i32, i32, i32
  }
  func.func @transform_4(%arg0: i32, %arg1: i32) -> (i32, i32, i32) {
    %c0_i32 = arith.constant 0 : i32
    %c0_i32_0 = arith.constant 0 : i32
    %c0_i32_1 = arith.constant 0 : i32
    return %arg1, %c0_i32, %c0_i32_0 : i32, i32, i32
  }
  func.func @transform_5(%arg0: i32, %arg1: i32) -> (i32, i32, i32) {
    %c0_i32 = arith.constant 0 : i32
    %c0_i32_0 = arith.constant 0 : i32
    %c0_i32_1 = arith.constant 0 : i32
    return %arg1, %c0_i32, %c0_i32_0 : i32, i32, i32
  }
  func.func @transform_6(%arg0: i32, %arg1: i32) -> (i32, i32, i32) {
    %c0_i32 = arith.constant 0 : i32
    %c0_i32_0 = arith.constant 0 : i32
    %c0_i32_1 = arith.constant 0 : i32
    return %arg1, %c0_i32, %c0_i32_0 : i32, i32, i32
  }
  func.func @transform_7(%arg0: i32, %arg1: i32) -> (i32, i32, i32) {
    %c0_i32 = arith.constant 0 : i32
    %c0_i32_0 = arith.constant 0 : i32
    %c0_i32_1 = arith.constant 0 : i32
    return %arg1, %c0_i32, %c0_i32_0 : i32, i32, i32
  }
  func.func @transform_8(%arg0: i32, %arg1: i32) -> (i32, i32, i32) {
    %c0_i32 = arith.constant 0 : i32
    %c0_i32_0 = arith.constant 0 : i32
    %c0_i32_1 = arith.constant 0 : i32
    return %arg1, %c0_i32, %c0_i32_0 : i32, i32, i32
  }
  func.func @transform_9(%arg0: i32, %arg1: i32) -> (i32, i32, i32) {
    %c0_i32 = arith.constant 0 : i32
    %c0_i32_0 = arith.constant 0 : i32
    %c0_i32_1 = arith.constant 0 : i32
    return %arg0, %c0_i32, %c0_i32_0 : i32, i32, i32
  }
}

</mosaic_0001>

<llo_original>
// kernel: tpu_custom_call.1
$region0: #{tpu_custom_call.1}
  #allocation0 [shape = 'u32[]', space=smem, size = 0x4, offset = 0x4, fixed_abs, tag = 'smem constant byte address 0x4 - core index']
  #allocation1 [shape = 'u32[144,128]{1,0:T(1,128)}', space=vmem, size = 0x12000, scoped, tag = 'internal scratch']
  #allocation2 [shape = 'f32[1,32,128]{2,1,0:T(8,128)}', space=vmem, size = 0x4000, scoped, tag = 'scratch operand']
  %s0 = inlined_call_operand.vmem [shape: f32[2,16,128], index: 0, kind: input, shape index: {}]
  %s1 = inlined_call_operand.vmem [shape: f32[4,7,128], index: 1, kind: input, shape index: {}]
  %s2 = inlined_call_operand.vmem [shape: f32[4,1,128], index: 2, kind: input, shape index: {}]
  %s3 = inlined_call_operand.vmem [shape: f32[4,1,128], index: 3, kind: input, shape index: {}]
  %s4 = inlined_call_operand.vmem [shape: f32[4,1,128], index: 4, kind: input, shape index: {}]
  %s5 = inlined_call_operand.hbm [shape: f32[4,128,128], index: 5, kind: input, shape index: {}]
  %s6 = inlined_call_operand.vmem [shape: f32[4,1,128], index: 6, kind: input, shape index: {}]
  %s7 = inlined_call_operand.hbm [shape: f32[4,128,128], index: 7, kind: input, shape index: {}]
  %s8 = inlined_call_operand.vmem [shape: f32[4,1,128], index: 8, kind: input, shape index: {}]
  %s9 = inlined_call_operand.hbm [shape: f32[2,16,128], index: 9, kind: output, shape index: {}]
  %s10 = sld [smem:[#allocation0]]
  $region81: #{tpu_custom_call.1} parent=0
    _
  %s12 = ssub.s32 1, %s10
  %s13 = scalar_select 0, %s12, %s10
  $region1: #{tpu_custom_call.1} parent=0
    #allocation3 [shape = 'u8[131072]{0}', space=vmem, size = 0x20000, scoped, tag = 'input window, operand 5']
    #allocation4 [shape = 's32[2]{0}', space=sflag, size = 0x8, scoped, tag = 'scoped memory for tpu_custom_call.1']
    #allocation5 [shape = 's32[2]{0}', space=sflag, size = 0x8, scoped, tag = 'scoped memory for tpu_custom_call.1']
    #allocation6 [shape = 'u8[131072]{0}', space=vmem, size = 0x20000, scoped, tag = 'input window, operand 7']
    #allocation7 [shape = 's32[2]{0}', space=sflag, size = 0x8, scoped, tag = 'scoped memory for tpu_custom_call.1']
    #allocation8 [shape = 'u8[16384]{0}', space=vmem, size = 0x4000, scoped, tag = 'output window, operand 0']
    %14 = vsyncpa [#allocation4], 0
    %s15 = scalar_lea.sflag [#allocation4], 1
    %16 = vsyncpa %s15, 0
    %17 = vsyncpa [#allocation7], 0
    %s18 = scalar_lea.sflag [#allocation7], 1
    %19 = vsyncpa %s18, 0
    %20 = vsyncpa [#allocation5], 0
    %s21 = scalar_lea.sflag [#allocation5], 1
    %22 = vsyncpa %s21, 0
    loop: start=0, step=1, limit=10
    $region2: #{tpu_custom_call.1} parent=1 // loop_pre_header
      _
    $region3: #{tpu_custom_call.1} parent=1 // loop_header
      %s24 = sphi 0, %s28
      %p25 = scmp.ge.s32.totalorder %s24, 10
      %s31 = sphi 0, %s43
      %s32 = sphi 0, %s39
      %s33 = sphi 0, %s31
      %s34 = sphi 0, %s32
      %s35 = sphi 0, %s33
      %s36 = sphi 0, %s34
      %s46 = sphi 0, %s48
      %s49 = sphi 0, %s46
      %s50 = sphi 0, %s49
      %s66 = sphi 0, %s50
      %s72 = sphi 0, %s74
      %s75 = sphi 0, %s72
      %s76 = sphi 0, %s75
      %s92 = sphi 0, %s76
      %s98 = sphi 0, %s100
      %s101 = sphi 0, %s98
      %s102 = sphi 0, %s101
      %s118 = sphi 0, %s102
      %s124 = sphi 0, %s126
      %s127 = sphi 0, %s124
      %s128 = sphi 0, %s127
      %s144 = sphi 0, %s128
      %s150 = sphi 0, %s152
      %s153 = sphi 0, %s150
      %s154 = sphi 0, %s153
      %s170 = sphi 0, %s154
      %s176 = sphi 0, %s178
      %s179 = sphi 0, %s176
      %s180 = sphi 0, %s179
      %s196 = sphi 0, %s180
      %s202 = sphi 0, %s204
      %s205 = sphi 0, %s202
      %s206 = sphi 0, %s205
      %s222 = sphi 0, %s206
      %s228 = sphi 0, %s230
      %s231 = sphi 0, %s228
      %s232 = sphi 0, %s231
      %s248 = sphi 0, %s232
      %s254 = sphi 0, %s256
      %s257 = sphi 0, %s254
      %s258 = sphi 0, %s257
      %s274 = sphi 0, %s258
      %s280 = sphi 0, %s282
      %s283 = sphi 0, %s280
      %s284 = sphi 0, %s283
      %s300 = sphi 0, %s284
    $region4: #{tpu_custom_call.1} parent=1 // loop_header_branch
      %27 = sbr.rel (%p25) target = $region8
    $region5: #{tpu_custom_call.1} parent=1 // loop_body
      %s29 = ssub.s32 %s24, 1
      %s30 = ssub.s32 %s24, 2
      %s37 = sadd.s32 1, %s32
      %p38 = scmp.ge.s32.totalorder %s37, 4
      %s39 = scalar_select %p38, 0, %s37
      %s40 = sadd.s32 1, %s31
      %s41 = scalar_select %p38, %s40, %s31
      %p42 = scmp.ge.s32.totalorder %s41, 2
      %s43 = scalar_select %p42, 0, %s41
      %s44 = ssub.s32 %s31, %s43
      %p45 = scmp.eq.s32.totalorder %s44, 0
      %s47 = sadd.s32 %s46, 1
      %s48 = scalar_select %p45, %s46, %s47
      %p51 = pneg %p45
      %p52 = scmp.eq.s32.totalorder %s24, 7
      %p53 = por %p51, %p52
      %p54 = scmp.ne.s32.totalorder %s46, %s49
      %p55 = scmp.eq.s32.totalorder %s24, 0
      %p56 = por %p54, %p55
      %p57 = scmp.ne.s32.totalorder %s46, %s49
      %p58 = scmp.eq.s32.totalorder %s29, 7
      %p59 = por %p57, %p58
      %p60 = scmp.ne.s32.totalorder %s49, %s50
      %p61 = scmp.eq.s32.totalorder %s29, 0
      %p62 = por %p60, %p61
      %p63 = scmp.ne.s32.totalorder %s49, %s50
      %p64 = scmp.eq.s32.totalorder %s30, 7
      %p65 = por %p63, %p64
      %p67 = scmp.ne.s32.totalorder %s50, %s66
      %p68 = scmp.eq.s32.totalorder %s30, 0
      %p69 = por %p67, %p68
      %s70 = ssub.s32 %s32, %s39
      %p71 = scmp.eq.s32.totalorder %s70, 0
      %s73 = sadd.s32 %s72, 1
      %s74 = scalar_select %p71, %s72, %s73
      %p77 = pneg %p71
      %p78 = scmp.eq.s32.totalorder %s24, 7
      %p79 = por %p77, %p78
      %p80 = scmp.ne.s32.totalorder %s72, %s75
      %p81 = scmp.eq.s32.totalorder %s24, 0
      %p82 = por %p80, %p81
      %p83 = scmp.ne.s32.totalorder %s72, %s75
      %p84 = scmp.eq.s32.totalorder %s29, 7
      %p85 = por %p83, %p84
      %p86 = scmp.ne.s32.totalorder %s75, %s76
      %p87 = scmp.eq.s32.totalorder %s29, 0
      %p88 = por %p86, %p87
      %p89 = scmp.ne.s32.totalorder %s75, %s76
      %p90 = scmp.eq.s32.totalorder %s30, 7
      %p91 = por %p89, %p90
      %p93 = scmp.ne.s32.totalorder %s76, %s92
      %p94 = scmp.eq.s32.totalorder %s30, 0
      %p95 = por %p93, %p94
      %s96 = ssub.s32 %s32, %s39
      %p97 = scmp.eq.s32.totalorder %s96, 0
      %s99 = sadd.s32 %s98, 1
      %s100 = scalar_select %p97, %s98, %s99
      %p103 = pneg %p97
      %p104 = scmp.eq.s32.totalorder %s24, 7
      %p105 = por %p103, %p104
      %p106 = scmp.ne.s32.totalorder %s98, %s101
      %p107 = scmp.eq.s32.totalorder %s24, 0
      %p108 = por %p106, %p107
      %p109 = scmp.ne.s32.totalorder %s98, %s101
      %p110 = scmp.eq.s32.totalorder %s29, 7
      %p111 = por %p109, %p110
      %p112 = scmp.ne.s32.totalorder %s101, %s102
      %p113 = scmp.eq.s32.totalorder %s29, 0
      %p114 = por %p112, %p113
      %p115 = scmp.ne.s32.totalorder %s101, %s102
      %p116 = scmp.eq.s32.totalorder %s30, 7
      %p117 = por %p115, %p116
      %p119 = scmp.ne.s32.totalorder %s102, %s118
      %p120 = scmp.eq.s32.totalorder %s30, 0
      %p121 = por %p119, %p120
      %s122 = ssub.s32 %s32, %s39
      %p123 = scmp.eq.s32.totalorder %s122, 0
      %s125 = sadd.s32 %s124, 1
      %s126 = scalar_select %p123, %s124, %s125
      %p129 = pneg %p123
      %p130 = scmp.eq.s32.totalorder %s24, 7
      %p131 = por %p129, %p130
      %p132 = scmp.ne.s32.totalorder %s124, %s127
      %p133 = scmp.eq.s32.totalorder %s24, 0
      %p134 = por %p132, %p133
      %p135 = scmp.ne.s32.totalorder %s124, %s127
      %p136 = scmp.eq.s32.totalorder %s29, 7
      %p137 = por %p135, %p136
      %p138 = scmp.ne.s32.totalorder %s127, %s128
      %p139 = scmp.eq.s32.totalorder %s29, 0
      %p140 = por %p138, %p139
      %p141 = scmp.ne.s32.totalorder %s127, %s128
      %p142 = scmp.eq.s32.totalorder %s30, 7
      %p143 = por %p141, %p142
      %p145 = scmp.ne.s32.totalorder %s128, %s144
      %p146 = scmp.eq.s32.totalorder %s30, 0
      %p147 = por %p145, %p146
      %s148 = ssub.s32 %s32, %s39
      %p149 = scmp.eq.s32.totalorder %s148, 0
      %s151 = sadd.s32 %s150, 1
      %s152 = scalar_select %p149, %s150, %s151
      %p155 = pneg %p149
      %p156 = scmp.eq.s32.totalorder %s24, 7
      %p157 = por %p155, %p156
      %p158 = scmp.ne.s32.totalorder %s150, %s153
      %p159 = scmp.eq.s32.totalorder %s24, 0
      %p160 = por %p158, %p159
      %p161 = scmp.ne.s32.totalorder %s150, %s153
      %p162 = scmp.eq.s32.totalorder %s29, 7
      %p163 = por %p161, %p162
      %p164 = scmp.ne.s32.totalorder %s153, %s154
      %p165 = scmp.eq.s32.totalorder %s29, 0
      %p166 = por %p164, %p165
      %p167 = scmp.ne.s32.totalorder %s153, %s154
      %p168 = scmp.eq.s32.totalorder %s30, 7
      %p169 = por %p167, %p168
      %p171 = scmp.ne.s32.totalorder %s154, %s170
      %p172 = scmp.eq.s32.totalorder %s30, 0
      %p173 = por %p171, %p172
      %s174 = ssub.s32 %s32, %s39
      %p175 = scmp.eq.s32.totalorder %s174, 0
      %s177 = sadd.s32 %s176, 1
      %s178 = scalar_select %p175, %s176, %s177
      %p181 = pneg %p175
      %p182 = scmp.eq.s32.totalorder %s24, 7
      %p183 = por %p181, %p182
      %p184 = scmp.ne.s32.totalorder %s176, %s179
      %p185 = scmp.eq.s32.totalorder %s24, 0
      %p186 = por %p184, %p185
      %p187 = scmp.ne.s32.totalorder %s176, %s179
      %p188 = scmp.eq.s32.totalorder %s29, 7
      %p189 = por %p187, %p188
      %p190 = scmp.ne.s32.totalorder %s179, %s180
      %p191 = scmp.eq.s32.totalorder %s29, 0
      %p192 = por %p190, %p191
      %p193 = scmp.ne.s32.totalorder %s179, %s180
      %p194 = scmp.eq.s32.totalorder %s30, 7
      %p195 = por %p193, %p194
      %p197 = scmp.ne.s32.totalorder %s180, %s196
      %p198 = scmp.eq.s32.totalorder %s30, 0
      %p199 = por %p197, %p198
      %s200 = ssub.s32 %s32, %s39
      %p201 = scmp.eq.s32.totalorder %s200, 0
      %s203 = sadd.s32 %s202, 1
      %s204 = scalar_select %p201, %s202, %s203
      %p207 = pneg %p201
      %p208 = scmp.eq.s32.totalorder %s24, 7
      %p209 = por %p207, %p208
      %p210 = scmp.ne.s32.totalorder %s202, %s205
      %p211 = scmp.eq.s32.totalorder %s24, 0
      %p212 = por %p210, %p211
      %p213 = scmp.ne.s32.totalorder %s202, %s205
      %p214 = scmp.eq.s32.totalorder %s29, 7
      %p215 = por %p213, %p214
      %p216 = scmp.ne.s32.totalorder %s205, %s206
      %p217 = scmp.eq.s32.totalorder %s29, 0
      %p218 = por %p216, %p217
      %p219 = scmp.ne.s32.totalorder %s205, %s206
      %p220 = scmp.eq.s32.totalorder %s30, 7
      %p221 = por %p219, %p220
      %p223 = scmp.ne.s32.totalorder %s206, %s222
      %p224 = scmp.eq.s32.totalorder %s30, 0
      %p225 = por %p223, %p224
      %s226 = ssub.s32 %s32, %s39
      %p227 = scmp.eq.s32.totalorder %s226, 0
      %s229 = sadd.s32 %s228, 1
      %s230 = scalar_select %p227, %s228, %s229
      %p233 = pneg %p227
      %p234 = scmp.eq.s32.totalorder %s24, 7
      %p235 = por %p233, %p234
      %p236 = scmp.ne.s32.totalorder %s228, %s231
      %p237 = scmp.eq.s32.totalorder %s24, 0
      %p238 = por %p236, %p237
      %p239 = scmp.ne.s32.totalorder %s228, %s231
      %p240 = scmp.eq.s32.totalorder %s29, 7
      %p241 = por %p239, %p240
      %p242 = scmp.ne.s32.totalorder %s231, %s232
      %p243 = scmp.eq.s32.totalorder %s29, 0
      %p244 = por %p242, %p243
      %p245 = scmp.ne.s32.totalorder %s231, %s232
      %p246 = scmp.eq.s32.totalorder %s30, 7
      %p247 = por %p245, %p246
      %p249 = scmp.ne.s32.totalorder %s232, %s248
      %p250 = scmp.eq.s32.totalorder %s30, 0
      %p251 = por %p249, %p250
      %s252 = ssub.s32 %s32, %s39
      %p253 = scmp.eq.s32.totalorder %s252, 0
      %s255 = sadd.s32 %s254, 1
      %s256 = scalar_select %p253, %s254, %s255
      %p259 = pneg %p253
      %p260 = scmp.eq.s32.totalorder %s24, 7
      %p261 = por %p259, %p260
      %p262 = scmp.ne.s32.totalorder %s254, %s257
      %p263 = scmp.eq.s32.totalorder %s24, 0
      %p264 = por %p262, %p263
      %p265 = scmp.ne.s32.totalorder %s254, %s257
      %p266 = scmp.eq.s32.totalorder %s29, 7
      %p267 = por %p265, %p266
      %p268 = scmp.ne.s32.totalorder %s257, %s258
      %p269 = scmp.eq.s32.totalorder %s29, 0
      %p270 = por %p268, %p269
      %p271 = scmp.ne.s32.totalorder %s257, %s258
      %p272 = scmp.eq.s32.totalorder %s30, 7
      %p273 = por %p271, %p272
      %p275 = scmp.ne.s32.totalorder %s258, %s274
      %p276 = scmp.eq.s32.totalorder %s30, 0
      %p277 = por %p275, %p276
      %s278 = ssub.s32 %s31, %s43
      %p279 = scmp.eq.s32.totalorder %s278, 0
      %s281 = sadd.s32 %s280, 1
      %s282 = scalar_select %p279, %s280, %s281
      %p285 = pneg %p279
      %p286 = scmp.eq.s32.totalorder %s24, 7
      %p287 = por %p285, %p286
      %p288 = scmp.ne.s32.totalorder %s280, %s283
      %p289 = scmp.eq.s32.totalorder %s24, 0
      %p290 = por %p288, %p289
      %p291 = scmp.ne.s32.totalorder %s280, %s283
      %p292 = scmp.eq.s32.totalorder %s29, 7
      %p293 = por %p291, %p292
      %p294 = scmp.ne.s32.totalorder %s283, %s284
      %p295 = scmp.eq.s32.totalorder %s29, 0
      %p296 = por %p294, %p295
      %p297 = scmp.ne.s32.totalorder %s283, %s284
      %p298 = scmp.eq.s32.totalorder %s30, 7
      %p299 = por %p297, %p298
      %p301 = scmp.ne.s32.totalorder %s284, %s300
      %p302 = scmp.eq.s32.totalorder %s30, 0
      %p303 = por %p301, %p302
      %p304 = scmp.le.s32.totalorder 1, %s24
      %p305 = scmp.lt.s32.totalorder %s24, 9
      %p306 = pnand %p304, %p305
      %p307 = pneg %p306
      // Predicated region
      $region9: #{tpu_custom_call.1} parent=5 // pred_check
        _
      $region10: #{tpu_custom_call.1} parent=5 // pred_check_branch
        %309 = sbr.rel (%p306) target = $region12
      $region11: #{tpu_custom_call.1} parent=5 // pred_region
        %s310 = ssub.s32 %s24, 1
      $region12: #{tpu_custom_call.1} parent=5 // pred_fallthru
        _
      %p311 = scmp.lt.s32.totalorder %s24, 8
      // Predicated region
      $region13: #{tpu_custom_call.1} parent=5 // pred_check
        %p312 = pneg %p311
      $region14: #{tpu_custom_call.1} parent=5 // pred_check_branch
        %314 = sbr.rel (%p312) target = $region16
      $region15: #{tpu_custom_call.1} parent=5 // pred_region
        // Predicated region
        $region17: #{tpu_custom_call.1} parent=15 // pred_check
          %p315 = pneg %p56
        $region18: #{tpu_custom_call.1} parent=15 // pred_check_branch
          %317 = sbr.rel (%p315) target = $region20
        $region19: #{tpu_custom_call.1} parent=15 // pred_region
          %p318 = scmp.lt.s32.totalorder %s31, 1
          %s319 = scalar_select %p318, %s31, 1
          %s320 = smul.addr %s319, 2
          %s321 = smul.addr %s320, 8
          %s322 = scalar_lea.vmem %s0, %s321
        $region20: #{tpu_custom_call.1} parent=15 // pred_fallthru
          _
        // Predicated region
        $region21: #{tpu_custom_call.1} parent=15 // pred_check
          %p323 = pneg %p82
        $region22: #{tpu_custom_call.1} parent=15 // pred_check_branch
          %325 = sbr.rel (%p323) target = $region24
        $region23: #{tpu_custom_call.1} parent=15 // pred_region
          %p326 = scmp.lt.s32.totalorder %s32, 3
          %s327 = scalar_select %p326, %s32, 3
          %s328 = smul.addr %s327, 8
          %s329 = scalar_lea.vmem %s1, %s328
        $region24: #{tpu_custom_call.1} parent=15 // pred_fallthru
          _
        // Predicated region
        $region25: #{tpu_custom_call.1} parent=15 // pred_check
          %p330 = pneg %p108
        $region26: #{tpu_custom_call.1} parent=15 // pred_check_branch
          %332 = sbr.rel (%p330) target = $region28
        $region27: #{tpu_custom_call.1} parent=15 // pred_region
          %p333 = scmp.lt.s32.totalorder %s32, 3
          %s334 = scalar_select %p333, %s32, 3
          %s335 = scalar_lea.vmem %s2, %s334
        $region28: #{tpu_custom_call.1} parent=15 // pred_fallthru
          _
        // Predicated region
        $region29: #{tpu_custom_call.1} parent=15 // pred_check
          %p336 = pneg %p134
        $region30: #{tpu_custom_call.1} parent=15 // pred_check_branch
          %338 = sbr.rel (%p336) target = $region32
        $region31: #{tpu_custom_call.1} parent=15 // pred_region
          %p339 = scmp.lt.s32.totalorder %s32, 3
          %s340 = scalar_select %p339, %s32, 3
          %s341 = scalar_lea.vmem %s3, %s340
        $region32: #{tpu_custom_call.1} parent=15 // pred_fallthru
          _
        // Predicated region
        $region33: #{tpu_custom_call.1} parent=15 // pred_check
          %p342 = pneg %p160
        $region34: #{tpu_custom_call.1} parent=15 // pred_check_branch
          %344 = sbr.rel (%p342) target = $region36
        $region35: #{tpu_custom_call.1} parent=15 // pred_region
          %p345 = scmp.lt.s32.totalorder %s32, 3
          %s346 = scalar_select %p345, %s32, 3
          %s347 = scalar_lea.vmem %s4, %s346
        $region36: #{tpu_custom_call.1} parent=15 // pred_fallthru
          _
        // Predicated region
        $region37: #{tpu_custom_call.1} parent=15 // pred_check
          %p348 = pneg %p186
        $region38: #{tpu_custom_call.1} parent=15 // pred_check_branch
          %350 = sbr.rel (%p348) target = $region40
        $region39: #{tpu_custom_call.1} parent=15 // pred_region
          %s351 = sand.u32 %s176, 1
          %s352 = scalar_lea.sflag [#allocation4], %s351
          %s353 = sand.u32 %s176, 1
          %s354 = smul.addr %s353, 128
          %s355 = scalar_lea.vmem [#allocation3], %s354
          %s357 = ssub.s32 2048, 2048
          %358 = vsyncadd %s352, %s357
          %s359 = smul.addr %s32, 16
          %s360 = smul.addr %s359, 128
          %s361 = scalar_lea.hbm %s5, %s360
          %s362 = sshll.u32 %s355, 4
          %s363 = int_to_ptr.vmem [resolvable:$true] %s362
          %368 = dma.hbm_to_vmem [thread:$0]  %s361, 2048, %s363, %s352, 128, 128, 8
        $region40: #{tpu_custom_call.1} parent=15 // pred_fallthru
          _
        // Predicated region
        $region41: #{tpu_custom_call.1} parent=15 // pred_check
          %p369 = pneg %p212
        $region42: #{tpu_custom_call.1} parent=15 // pred_check_branch
          %371 = sbr.rel (%p369) target = $region44
        $region43: #{tpu_custom_call.1} parent=15 // pred_region
          %p372 = scmp.lt.s32.totalorder %s32, 3
          %s373 = scalar_select %p372, %s32, 3
          %s374 = scalar_lea.vmem %s6, %s373
        $region44: #{tpu_custom_call.1} parent=15 // pred_fallthru
          _
        // Predicated region
        $region45: #{tpu_custom_call.1} parent=15 // pred_check
          %p375 = pneg %p238
        $region46: #{tpu_custom_call.1} parent=15 // pred_check_branch
          %377 = sbr.rel (%p375) target = $region48
        $region47: #{tpu_custom_call.1} parent=15 // pred_region
          %s378 = sand.u32 %s228, 1
          %s379 = scalar_lea.sflag [#allocation7], %s378
          %s380 = sand.u32 %s228, 1
          %s381 = smul.addr %s380, 128
          %s382 = scalar_lea.vmem [#allocation6], %s381
          %s384 = ssub.s32 2048, 2048
          %385 = vsyncadd %s379, %s384
          %s386 = smul.addr %s32, 16
          %s387 = smul.addr %s386, 128
          %s388 = scalar_lea.hbm %s7, %s387
          %s389 = sshll.u32 %s382, 4
          %s390 = int_to_ptr.vmem [resolvable:$true] %s389
          %395 = dma.hbm_to_vmem [thread:$0]  %s388, 2048, %s390, %s379, 128, 128, 8
        $region48: #{tpu_custom_call.1} parent=15 // pred_fallthru
          _
        // Predicated region
        $region49: #{tpu_custom_call.1} parent=15 // pred_check
          %p396 = pneg %p264
        $region50: #{tpu_custom_call.1} parent=15 // pred_check_branch
          %398 = sbr.rel (%p396) target = $region52
        $region51: #{tpu_custom_call.1} parent=15 // pred_region
          %p399 = scmp.lt.s32.totalorder %s32, 3
          %s400 = scalar_select %p399, %s32, 3
          %s401 = scalar_lea.vmem %s8, %s400
        $region52: #{tpu_custom_call.1} parent=15 // pred_fallthru
          _
      $region16: #{tpu_custom_call.1} parent=5 // pred_fallthru
        _
      %p402 = scmp.le.s32.totalorder 1, %s24
      %p403 = scmp.lt.s32.totalorder %s24, 9
      %p404 = pnand %p402, %p403
      %p405 = pneg %p404
      // Predicated region
      $region53: #{tpu_custom_call.1} parent=5 // pred_check
        _
      $region54: #{tpu_custom_call.1} parent=5 // pred_check_branch
        %407 = sbr.rel (%p404) target = $region56
      $region55: #{tpu_custom_call.1} parent=5 // pred_region
        %s408 = ssub.s32 %s24, 1
        %s409 = sand.u32 %s179, 1
        %s410 = scalar_lea.sflag [#allocation4], %s409
        %s411 = sand.u32 %s179, 1
        %s412 = smul.addr %s411, 128
        %s413 = scalar_lea.vmem [#allocation3], %s412
        // Predicated region
        $region57: #{tpu_custom_call.1} parent=55 // pred_check
          %p414 = pneg %p192
        $region58: #{tpu_custom_call.1} parent=55 // pred_check_branch
          %416 = sbr.rel (%p414) target = $region60
        $region59: #{tpu_custom_call.1} parent=55 // pred_region
          %417 = dma.done %s410, 2048
        $region60: #{tpu_custom_call.1} parent=55 // pred_fallthru
          _
        %s418 = sand.u32 %s231, 1
        %s419 = scalar_lea.sflag [#allocation7], %s418
        %s420 = sand.u32 %s231, 1
        %s421 = smul.addr %s420, 128
        %s422 = scalar_lea.vmem [#allocation6], %s421
        // Predicated region
        $region61: #{tpu_custom_call.1} parent=55 // pred_check
          %p423 = pneg %p244
        $region62: #{tpu_custom_call.1} parent=55 // pred_check_branch
          %425 = sbr.rel (%p423) target = $region64
        $region63: #{tpu_custom_call.1} parent=55 // pred_region
          %426 = dma.done %s419, 2048
        $region64: #{tpu_custom_call.1} parent=55 // pred_fallthru
          _
        %p427 = scmp.lt.s32.totalorder %s33, 1
        %s428 = scalar_select %p427, %s33, 1
        %s429 = smul.addr %s428, 2
        %s430 = smul.addr %s429, 8
        %s431 = scalar_lea.vmem %s0, %s430
        %p432 = pneg %p62
        %p433 = pneg %p59
        %p434 = scmp.lt.s32.totalorder %s34, 3
        %s435 = scalar_select %p434, %s34, 3
        %s436 = smul.addr %s435, 8
        %s437 = scalar_lea.vmem %s1, %s436
        %p438 = pneg %p88
        %p439 = pneg %p85
        %p440 = scmp.lt.s32.totalorder %s34, 3
        %s441 = scalar_select %p440, %s34, 3
        %s442 = scalar_lea.vmem %s2, %s441
        %p443 = pneg %p114
        %p444 = pneg %p111
        %p445 = scmp.lt.s32.totalorder %s34, 3
        %s446 = scalar_select %p445, %s34, 3
        %s447 = scalar_lea.vmem %s3, %s446
        %p448 = pneg %p140
        %p449 = pneg %p137
        %p450 = scmp.lt.s32.totalorder %s34, 3
        %s451 = scalar_select %p450, %s34, 3
        %s452 = scalar_lea.vmem %s4, %s451
        %p453 = pneg %p166
        %p454 = pneg %p163
        %s455 = sand.u32 %s179, 1
        %s456 = scalar_lea.sflag [#allocation4], %s455
        %s457 = sand.u32 %s179, 1
        %s458 = smul.addr %s457, 128
        %s459 = scalar_lea.vmem [#allocation3], %s458
        %p460 = pneg %p192
        %p461 = pneg %p189
        %p462 = scmp.lt.s32.totalorder %s34, 3
        %s463 = scalar_select %p462, %s34, 3
        %s464 = scalar_lea.vmem %s6, %s463
        %p465 = pneg %p218
        %p466 = pneg %p215
        %s467 = sand.u32 %s231, 1
        %s468 = scalar_lea.sflag [#allocation7], %s467
        %s469 = sand.u32 %s231, 1
        %s470 = smul.addr %s469, 128
        %s471 = scalar_lea.vmem [#allocation6], %s470
        %p472 = pneg %p244
        %p473 = pneg %p241
        %p474 = scmp.lt.s32.totalorder %s34, 3
        %s475 = scalar_select %p474, %s34, 3
        %s476 = scalar_lea.vmem %s8, %s475
        %p477 = pneg %p270
        %p478 = pneg %p267
        %p479 = pneg %p296
        %p480 = pneg %p293
        %s481 = sand.u32 %s283, 1
        %s482 = scalar_lea.sflag [#allocation5], %s481
        %s483 = sand.u32 %s283, 1
        %s484 = smul.addr %s483, 16
        %s485 = scalar_lea.vmem [#allocation8], %s484
        %p486 = scmp.lt.s32.totalorder %s33, 1
        %s487 = scalar_select %p486, %s33, 1
        %s488 = smul.addr %s487, 2
        %s489 = smul.addr %s488, 8
        %s490 = scalar_lea.vmem %s0, %s489
        %p491 = scmp.lt.s32.totalorder %s34, 3
        %s492 = scalar_select %p491, %s34, 3
        %s493 = smul.addr %s492, 8
        %s494 = scalar_lea.vmem %s1, %s493
        %p495 = scmp.lt.s32.totalorder %s34, 3
        %s496 = scalar_select %p495, %s34, 3
        %s497 = scalar_lea.vmem %s2, %s496
        %p498 = scmp.lt.s32.totalorder %s34, 3
        %s499 = scalar_select %p498, %s34, 3
        %s500 = scalar_lea.vmem %s3, %s499
        %p501 = scmp.lt.s32.totalorder %s34, 3
        %s502 = scalar_select %p501, %s34, 3
        %s503 = scalar_lea.vmem %s4, %s502
        %p504 = scmp.lt.s32.totalorder %s34, 3
        %s505 = scalar_select %p504, %s34, 3
        %s506 = scalar_lea.vmem %s6, %s505
        %p507 = scmp.lt.s32.totalorder %s34, 3
        %s508 = scalar_select %p507, %s34, 3
        %s509 = scalar_lea.vmem %s8, %s508
        %p510 = scmp.eq.s32.totalorder %s34, 0
        // Predicated region
        $region65: #{tpu_custom_call.1} parent=55 // pred_check
          %p511 = pneg %p510
        $region66: #{tpu_custom_call.1} parent=55 // pred_check_branch
          %513 = sbr.rel (%p511) target = $region68
        $region67: #{tpu_custom_call.1} parent=55 // pred_region
          %v514 = vld [vmem:[%s490] sm:$0xff]
          %v515 = vld [vmem:[%s490 + $0x8] sm:$0xff]
          %516 = vst [vmem:[%s485] sm:$0xff] %v514
          %517 = vst [vmem:[%s485 + $0x8] sm:$0xff] %v515
          %518 = vst [vmem:[#allocation2] sm:$0xff] 0.0
          %519 = vst [vmem:[#allocation2 + $0x8] sm:$0xff] 0.0
          %520 = vst [vmem:[#allocation2 + $0x10] sm:$0xff] 0.0
          %521 = vst [vmem:[#allocation2 + $0x18] sm:$0xff] 0.0
        $region68: #{tpu_custom_call.1} parent=55 // pred_fallthru
          _
        %v522 = vld [vmem:[%s485] sm:$0xff]
        %v523 = vld [vmem:[%s485 + $0x8] sm:$0xff]
        %524 = vst [vmem:[#allocation2 + $0x8] sm:$0xff] %v522
        %525 = vst [vmem:[#allocation2 + $0x10] sm:$0xff] %v523
        %v526 = vld [vmem:[#allocation2] sm:$0xff]
        %v527 = vld [vmem:[#allocation2 + $0x8] sm:$0xff]
        %v528 = vld [vmem:[#allocation2 + $0x10] sm:$0xff]
        %v529 = vld [vmem:[#allocation2 + $0x18] sm:$0xff]
        %v530 = vld [vmem:[%s494] sm:$0x7f]
        %v531 = vlaneseq
        %v532 = vshrl.u32 %v531, 7
        %v533 = vsub.s32 0, %v532
        %v534 = vrot.slane %v530, %v533
        %v535 = vmul.f32 %v526, %v534
        %v536 = vmul.f32 %v527, %v534
        %v537 = vmul.f32 %v528, %v534
        %v538 = vlaneseq
        %v539 = vshrl.u32 %v538, 7
        %v540 = vsub.s32 1, %v539
        %v541 = vrot.slane %v530, %v540
        %v542 = vmul.f32 %v526, %v541
        %v543 = vmul.f32 %v527, %v541
        %v544 = vmul.f32 %v528, %v541
        %vm548 = vcmask 1046528
        %v549 = vrot.slane %v542, 1
        %v550 = vrot.slane %v543, 1
        %v551 = vsel %vm548, %v549, %v550
        %v552 = vrot.slane %v544, 1
        %v553 = vsel %vm548, %v550, %v552
        %v557 = vadd.f32 %v535, %v551
        %v558 = vadd.f32 %v536, %v553
        %v559 = vadd.f32 %v537, %v552
        %v560 = vlaneseq
        %v561 = vshrl.u32 %v560, 7
        %v562 = vsub.s32 2, %v561
        %v563 = vrot.slane %v530, %v562
        %v564 = vmul.f32 %v526, %v563
        %v565 = vmul.f32 %v527, %v563
        %v566 = vmul.f32 %v528, %v563
        %vm570 = vcmask 1045504
        %v571 = vrot.slane %v564, 2
        %v572 = vrot.slane %v565, 2
        %v573 = vsel %vm570, %v571, %v572
        %v574 = vrot.slane %v566, 2
        %v575 = vsel %vm570, %v572, %v574
        %v579 = vadd.f32 %v557, %v573
        %v580 = vadd.f32 %v558, %v575
        %v581 = vadd.f32 %v559, %v574
        %v582 = vlaneseq
        %v583 = vshrl.u32 %v582, 7
        %v584 = vsub.s32 3, %v583
        %v585 = vrot.slane %v530, %v584
        %v586 = vmul.f32 %v527, %v585
        %v587 = vmul.f32 %v528, %v585
        %vm590 = vcmask 1044480
        %v591 = vrot.slane %v586, 3
        %v592 = vrot.slane %v587, 3
        %v593 = vsel %vm590, %v591, %v592
        %v597 = vadd.f32 %v579, %v591
        %v598 = vadd.f32 %v580, %v593
        %v599 = vadd.f32 %v581, %v592
        %v600 = vlaneseq
        %v601 = vshrl.u32 %v600, 7
        %v602 = vsub.s32 4, %v601
        %v603 = vrot.slane %v530, %v602
        %v604 = vmul.f32 %v527, %v603
        %v605 = vmul.f32 %v528, %v603
        %v606 = vmul.f32 %v529, %v603
        %vm610 = vcmask 1043456
        %v611 = vrot.slane %v604, 4
        %v612 = vrot.slane %v605, 4
        %v613 = vsel %vm610, %v611, %v612
        %v614 = vrot.slane %v606, 4
        %v615 = vsel %vm610, %v612, %v614
        %v619 = vadd.f32 %v597, %v611
        %v620 = vadd.f32 %v598, %v613
        %v621 = vadd.f32 %v599, %v615
        %v622 = vlaneseq
        %v623 = vshrl.u32 %v622, 7
        %v624 = vsub.s32 5, %v623
        %v625 = vrot.slane %v530, %v624
        %v626 = vmul.f32 %v527, %v625
        %v627 = vmul.f32 %v528, %v625
        %v628 = vmul.f32 %v529, %v625
        %vm632 = vcmask 1042432
        %v633 = vrot.slane %v626, 5
        %v634 = vrot.slane %v627, 5
        %v635 = vsel %vm632, %v633, %v634
        %v636 = vrot.slane %v628, 5
        %v637 = vsel %vm632, %v634, %v636
        %v641 = vadd.f32 %v619, %v633
        %v642 = vadd.f32 %v620, %v635
        %v643 = vadd.f32 %v621, %v637
        %v644 = vlaneseq
        %v645 = vshrl.u32 %v644, 7
        %v646 = vsub.s32 6, %v645
        %v647 = vrot.slane %v530, %v646
        %v648 = vmul.f32 %v527, %v647
        %v649 = vmul.f32 %v528, %v647
        %v650 = vmul.f32 %v529, %v647
        %vm654 = vcmask 1041408
        %v655 = vrot.slane %v648, 6
        %v656 = vrot.slane %v649, 6
        %v657 = vsel %vm654, %v655, %v656
        %v658 = vrot.slane %v650, 6
        %v659 = vsel %vm654, %v656, %v658
        %v663 = vadd.f32 %v641, %v655
        %v664 = vadd.f32 %v642, %v657
        %v665 = vadd.f32 %v643, %v659
        %v666 = vld [vmem:[%s497] sm:$0x1]
        %v668 = vlaneseq
        %v669 = vshrl.u32 %v668, 7
        %v670 = vsub.s32 0, %v669
        %v671 = vrot.slane %v666, %v670
        %v673 = vadd.f32 %v663, %v671
        %v674 = vadd.f32 %v664, %v671
        %v675 = vadd.f32 %v665, %v671
        %vm676 = vcmask 1047557
        %v677 = vsel %vm676, %v673, 0.0
        %678 = vadd.xlane.f32.xlu0 %v677
        %v679 = vpop.xlane.xlu0 %678
        %680 = vadd.xlane.f32.xlu0 %v674
        %v681 = vpop.xlane.xlu0 %680
        %v682 = vsel %vm590, %v675, 0.0
        %683 = vadd.xlane.f32.xlu0 %v682
        %v684 = vpop.xlane.xlu0 %683
        %v685 = vmul.f32 %v679, 0.125
        %v686 = vmul.f32 %v681, 0.125
        %v687 = vmul.f32 %v684, 0.125
        %v688 = vsub.f32 %v673, %v685
        %v689 = vsub.f32 %v674, %v686
        %v690 = vsub.f32 %v675, %v687
        %v691 = vlaneseq
        %v692 = vand.u32 %v691, 127
        %vm693 = vcmp.lt.s32.totalorder %v692, 8
        %v694 = vsel %vm693, 1, 0
        %vm695 = vcmp.eq.s32.totalorder %v694, 1
        %v696 = vsel %vm695, %v688, 0.0
        %v697 = vsel %vm695, %v689, 0.0
        %v698 = vsel %vm695, %v690, 0.0
        %v699 = vmul.f32 %v696, %v696
        %v700 = vmul.f32 %v697, %v697
        %v701 = vmul.f32 %v698, %v698
        %v702 = vsel %vm676, %v699, 0.0
        %703 = vadd.xlane.f32.xlu0 %v702
        %v704 = vpop.xlane.xlu0 %703
        %705 = vadd.xlane.f32.xlu0 %v700
        %v706 = vpop.xlane.xlu0 %705
        %v707 = vsel %vm590, %v701, 0.0
        %708 = vadd.xlane.f32.xlu0 %v707
        %v709 = vpop.xlane.xlu0 %708
        %v710 = vmul.f32 %v704, 0.125
        %v711 = vmul.f32 %v706, 0.125
        %v712 = vmul.f32 %v709, 0.125
        %v713 = vadd.f32 %v710, 1e-05
        %v714 = vadd.f32 %v711, 1e-05
        %v715 = vadd.f32 %v712, 1e-05
        %v716 = vrsqrt.pop %v713
        %v717 = vrsqrt.pop %v714
        %v718 = vrsqrt.pop %v715
        %v719 = vmul.f32 %v688, %v716
        %v720 = vmul.f32 %v689, %v717
        %v721 = vmul.f32 %v690, %v718
        %v722 = vld [vmem:[%s500] sm:$0x1]
        %v724 = vlaneseq
        %v725 = vshrl.u32 %v724, 7
        %v726 = vsub.s32 0, %v725
        %v727 = vrot.slane %v722, %v726
        %v729 = vmul.f32 %v719, %v727
        %v730 = vmul.f32 %v720, %v727
        %v731 = vmul.f32 %v721, %v727
        %v732 = vld [vmem:[%s503] sm:$0x1]
        %v734 = vlaneseq
        %v735 = vshrl.u32 %v734, 7
        %v736 = vsub.s32 0, %v735
        %v737 = vrot.slane %v732, %v736
        %v739 = vadd.f32 %v729, %v737
        %v740 = vadd.f32 %v730, %v737
        %v741 = vadd.f32 %v731, %v737
        %v742 = vld [vmem:[%s413] sm:$0xff]
        %v743 = vld [vmem:[%s413 + $0x8] sm:$0xff]
        %v744 = vld [vmem:[%s413 + $0x10] sm:$0xff]
        %v745 = vld [vmem:[%s413 + $0x18] sm:$0xff]
        %v746 = vld [vmem:[%s413 + $0x20] sm:$0xff]
        %v747 = vld [vmem:[%s413 + $0x28] sm:$0xff]
        %v748 = vld [vmem:[%s413 + $0x30] sm:$0xff]
        %v749 = vld [vmem:[%s413 + $0x38] sm:$0xff]
        %v750 = vld [vmem:[%s413 + $0x40] sm:$0xff]
        %v751 = vld [vmem:[%s413 + $0x48] sm:$0xff]
        %v752 = vld [vmem:[%s413 + $0x50] sm:$0xff]
        %v753 = vld [vmem:[%s413 + $0x58] sm:$0xff]
        %v754 = vld [vmem:[%s413 + $0x60] sm:$0xff]
        %v755 = vld [vmem:[%s413 + $0x68] sm:$0xff]
        %v756 = vld [vmem:[%s413 + $0x70] sm:$0xff]
        %v757 = vld [vmem:[%s413 + $0x78] sm:$0xff]
        %v758 = vld [vmem:[%s506] sm:$0x1]
        %v760 = vlaneseq
        %v761 = vshrl.u32 %v760, 7
        %v762 = vsub.s32 0, %v761
        %v763 = vrot.slane %v758, %v762
        %v768 = vrot.slane %v739, 5
        %v769 = vrot.slane %v740, 5
        %v770 = vsel %vm632, %v768, %v769
        %v771 = vrot.slane %v741, 5
        %v772 = vsel %vm632, %v769, %v771
        %775 = vmatprep.subr.mxu0 0.0
        %776 = vmatpush1.msra.mxu0 %v757
        %777 = vmatprep.subr.mxu0 0.0
        %778 = vmatpush1.msra.mxu0 %v756
        %779 = vmatprep.subr.mxu0 0.0
        %780 = vmatpush1.msra.mxu0 %v755
        %781 = vmatprep.subr.mxu0 0.0
        %782 = vmatpush1.msra.mxu0 %v754
        %783 = vmatprep.subr.mxu0 0.0
        %784 = vmatpush1.msra.mxu0 %v753
        %785 = vmatprep.subr.mxu0 0.0
        %786 = vmatpush1.msra.mxu0 %v752
        %787 = vmatprep.subr.mxu0 0.0
        %788 = vmatpush1.msra.mxu0 %v751
        %789 = vmatprep.subr.mxu0 0.0
        %790 = vmatpush1.msra.mxu0 %v750
        %791 = vmatprep.subr.mxu0 0.0
        %792 = vmatpush1.msra.mxu0 %v749
        %793 = vmatprep.subr.mxu0 0.0
        %794 = vmatpush1.msra.mxu0 %v748
        %795 = vmatprep.subr.mxu0 0.0
        %796 = vmatpush1.msra.mxu0 %v747
        %797 = vmatprep.subr.mxu0 0.0
        %798 = vmatpush1.msra.mxu0 %v746
        %799 = vmatprep.subr.mxu0 0.0
        %800 = vmatpush1.msra.mxu0 %v745
        %801 = vmatprep.subr.mxu0 0.0
        %802 = vmatpush1.msra.mxu0 %v744
        %803 = vmatprep.subr.mxu0 0.0
        %804 = vmatpush1.msra.mxu0 %v743
        %805 = vmatprep.subr.mxu0 0.0
        %806 = vmatpush1.msra.mxu0 %v742
        %807 = vmatprep.subr.mxu0 0.0
        %808 = vmatpush2.msra.mxu0 0.0
        %809 = vmatprep.subr.mxu0 0.0
        %810 = vmatpush2.msra.mxu0 0.0
        %811 = vmatprep.subr.mxu0 0.0
        %812 = vmatpush2.msra.mxu0 0.0
        %813 = vmatprep.subr.mxu0 0.0
        %814 = vmatpush2.msra.mxu0 0.0
        %815 = vmatprep.subr.mxu0 0.0
        %816 = vmatpush2.msra.mxu0 0.0
        %817 = vmatprep.subr.mxu0 0.0
        %818 = vmatpush2.msra.mxu0 0.0
        %819 = vmatprep.subr.mxu0 0.0
        %820 = vmatpush2.msra.mxu0 0.0
        %821 = vmatprep.subr.mxu0 0.0
        %822 = vmatpush2.msra.mxu0 0.0
        %823 = vmatprep.subr.mxu0 0.0
        %824 = vmatpush2.msra.mxu0 0.0
        %825 = vmatprep.subr.mxu0 0.0
        %826 = vmatpush2.msra.mxu0 0.0
        %827 = vmatprep.subr.mxu0 0.0
        %828 = vmatpush2.msra.mxu0 0.0
        %829 = vmatprep.subr.mxu0 0.0
        %830 = vmatpush2.msra.mxu0 0.0
        %831 = vmatprep.subr.mxu0 0.0
        %832 = vmatpush2.msra.mxu0 0.0
        %833 = vmatprep.subr.mxu0 0.0
        %834 = vmatpush2.msra.mxu0 0.0
        %835 = vmatprep.subr.mxu0 0.0
        %836 = vmatpush2.msra.mxu0 0.0
        %837 = vmatprep.subr.mxu0 0.0
        %838 = vmatpush2.msra.mxu0 0.0
        %839 = vmatprep.mubr.f32.mxu0 0.0
        %840 = vmatmul.mubr.f32.gmra.mxu0 %v770
        %v841 = vpop.f32.mrf.mxu0
        %v842 = vadd.f32 %v763, %v841
        %v843 = vpop.f32.mrf.mxu0
        %844 = vmatprep.mubr.f32.mxu0 0.0
        %845 = vmatmul.mubr.f32.gmra.mxu0 %v772
        %v846 = vpop.f32.mrf.mxu0
        %v847 = vadd.f32 %v763, %v846
        %v848 = vpop.f32.mrf.mxu0
        %849 = vdwg.mxu0
        %v850 = vmul.f32 %v842, 0.5
        %v851 = vmul.f32 %v847, 0.5
        %v852 = vmul.f32 %v842, 0.70710677
        %v853 = vmul.f32 %v847, 0.70710677
        %v854 = verf.f32.pop %v852
        %v855 = verf.f32.pop %v853
        %v856 = vadd.f32 %v854, 1.0
        %v857 = vadd.f32 %v855, 1.0
        %v858 = vmul.f32 %v850, %v856
        %v859 = vmul.f32 %v851, %v857
        %v860 = vld [vmem:[%s422] sm:$0xff]
        %v861 = vld [vmem:[%s422 + $0x8] sm:$0xff]
        %v862 = vld [vmem:[%s422 + $0x10] sm:$0xff]
        %v863 = vld [vmem:[%s422 + $0x18] sm:$0xff]
        %v864 = vld [vmem:[%s422 + $0x20] sm:$0xff]
        %v865 = vld [vmem:[%s422 + $0x28] sm:$0xff]
        %v866 = vld [vmem:[%s422 + $0x30] sm:$0xff]
        %v867 = vld [vmem:[%s422 + $0x38] sm:$0xff]
        %v868 = vld [vmem:[%s422 + $0x40] sm:$0xff]
        %v869 = vld [vmem:[%s422 + $0x48] sm:$0xff]
        %v870 = vld [vmem:[%s422 + $0x50] sm:$0xff]
        %v871 = vld [vmem:[%s422 + $0x58] sm:$0xff]
        %v872 = vld [vmem:[%s422 + $0x60] sm:$0xff]
        %v873 = vld [vmem:[%s422 + $0x68] sm:$0xff]
        %v874 = vld [vmem:[%s422 + $0x70] sm:$0xff]
        %v875 = vld [vmem:[%s422 + $0x78] sm:$0xff]
        %v876 = vld [vmem:[%s509] sm:$0x1]
        %v878 = vlaneseq
        %v879 = vshrl.u32 %v878, 7
        %v880 = vsub.s32 0, %v879
        %v881 = vrot.slane %v876, %v880
        %883 = vmatprep.subr.mxu0 0.0
        %884 = vmatpush1.msra.mxu0 %v875
        %885 = vmatprep.subr.mxu0 0.0
        %886 = vmatpush1.msra.mxu0 %v874
        %887 = vmatprep.subr.mxu0 0.0
        %888 = vmatpush1.msra.mxu0 %v873
        %889 = vmatprep.subr.mxu0 0.0
        %890 = vmatpush1.msra.mxu0 %v872
        %891 = vmatprep.subr.mxu0 0.0
        %892 = vmatpush1.msra.mxu0 %v871
        %893 = vmatprep.subr.mxu0 0.0
        %894 = vmatpush1.msra.mxu0 %v870
        %895 = vmatprep.subr.mxu0 0.0
        %896 = vmatpush1.msra.mxu0 %v869
        %897 = vmatprep.subr.mxu0 0.0
        %898 = vmatpush1.msra.mxu0 %v868
        %899 = vmatprep.subr.mxu0 0.0
        %900 = vmatpush1.msra.mxu0 %v867
        %901 = vmatprep.subr.mxu0 0.0
        %902 = vmatpush1.msra.mxu0 %v866
        %903 = vmatprep.subr.mxu0 0.0
        %904 = vmatpush1.msra.mxu0 %v865
        %905 = vmatprep.subr.mxu0 0.0
        %906 = vmatpush1.msra.mxu0 %v864
        %907 = vmatprep.subr.mxu0 0.0
        %908 = vmatpush1.msra.mxu0 %v863
        %909 = vmatprep.subr.mxu0 0.0
        %910 = vmatpush1.msra.mxu0 %v862
        %911 = vmatprep.subr.mxu0 0.0
        %912 = vmatpush1.msra.mxu0 %v861
        %913 = vmatprep.subr.mxu0 0.0
        %914 = vmatpush1.msra.mxu0 %v860
        %915 = vmatprep.subr.mxu0 0.0
        %916 = vmatpush2.msra.mxu0 0.0
        %917 = vmatprep.subr.mxu0 0.0
        %918 = vmatpush2.msra.mxu0 0.0
        %919 = vmatprep.subr.mxu0 0.0
        %920 = vmatpush2.msra.mxu0 0.0
        %921 = vmatprep.subr.mxu0 0.0
        %922 = vmatpush2.msra.mxu0 0.0
        %923 = vmatprep.subr.mxu0 0.0
        %924 = vmatpush2.msra.mxu0 0.0
        %925 = vmatprep.subr.mxu0 0.0
        %926 = vmatpush2.msra.mxu0 0.0
        %927 = vmatprep.subr.mxu0 0.0
        %928 = vmatpush2.msra.mxu0 0.0
        %929 = vmatprep.subr.mxu0 0.0
        %930 = vmatpush2.msra.mxu0 0.0
        %931 = vmatprep.subr.mxu0 0.0
        %932 = vmatpush2.msra.mxu0 0.0
        %933 = vmatprep.subr.mxu0 0.0
        %934 = vmatpush2.msra.mxu0 0.0
        %935 = vmatprep.subr.mxu0 0.0
        %936 = vmatpush2.msra.mxu0 0.0
        %937 = vmatprep.subr.mxu0 0.0
        %938 = vmatpush2.msra.mxu0 0.0
        %939 = vmatprep.subr.mxu0 0.0
        %940 = vmatpush2.msra.mxu0 0.0
        %941 = vmatprep.subr.mxu0 0.0
        %942 = vmatpush2.msra.mxu0 0.0
        %943 = vmatprep.subr.mxu0 0.0
        %944 = vmatpush2.msra.mxu0 0.0
        %945 = vmatprep.subr.mxu0 0.0
        %946 = vmatpush2.msra.mxu0 0.0
        %947 = vmatprep.mubr.f32.mxu0 0.0
        %948 = vmatmul.mubr.f32.gmra.mxu0 %v858
        %v949 = vpop.f32.mrf.mxu0
        %v950 = vadd.f32 %v881, %v949
        %v951 = vpop.f32.mrf.mxu0
        %952 = vmatprep.mubr.f32.mxu0 0.0
        %953 = vmatmul.mubr.f32.gmra.mxu0 %v859
        %v954 = vpop.f32.mrf.mxu0
        %v955 = vadd.f32 %v881, %v954
        %v956 = vpop.f32.mrf.mxu0
        %957 = vdwg.mxu0
        %v958 = vadd.f32 %v522, %v950
        %v959 = vadd.f32 %v523, %v955
        %960 = vst [vmem:[%s485] sm:$0xff] %v958
        %961 = vst [vmem:[%s485 + $0x8] sm:$0xff] %v959
        %s962 = sand.u32 %s283, 1
        %s963 = scalar_lea.sflag [#allocation5], %s962
        %s964 = sand.u32 %s283, 1
        %s965 = smul.addr %s964, 16
        %s966 = scalar_lea.vmem [#allocation8], %s965
        // Predicated region
        $region69: #{tpu_custom_call.1} parent=55 // pred_check
          %p967 = pneg %p293
        $region70: #{tpu_custom_call.1} parent=55 // pred_check_branch
          %969 = sbr.rel (%p967) target = $region72
        $region71: #{tpu_custom_call.1} parent=55 // pred_region
          %s971 = ssub.s32 256, 256
          %972 = vsyncadd %s963, %s971
          %s973 = smul.addr %s33, 2
          %s974 = smul.addr %s973, 128
          %s975 = scalar_lea.hbm %s9, %s974
          %s976 = sshll.u32 %s966, 4
          %s977 = int_to_ptr.vmem [resolvable:$true] %s976
          %982 = dma.vmem_to_hbm [thread:$0]  %s977, 256, %s975, %s963, 128, 128, 8
        $region72: #{tpu_custom_call.1} parent=55 // pred_fallthru
          _
      $region56: #{tpu_custom_call.1} parent=5 // pred_fallthru
        _
      %p983 = scmp.le.s32.totalorder 2, %s24
      // Predicated region
      $region73: #{tpu_custom_call.1} parent=5 // pred_check
        %p984 = pneg %p983
      $region74: #{tpu_custom_call.1} parent=5 // pred_check_branch
        %986 = sbr.rel (%p984) target = $region76
      $region75: #{tpu_custom_call.1} parent=5 // pred_region
        %s987 = ssub.s32 %s24, 2
        // Predicated region
        $region77: #{tpu_custom_call.1} parent=75 // pred_check
          %p988 = pneg %p299
        $region78: #{tpu_custom_call.1} parent=75 // pred_check_branch
          %990 = sbr.rel (%p988) target = $region80
        $region79: #{tpu_custom_call.1} parent=75 // pred_region
          %s991 = sand.u32 %s284, 1
          %s992 = scalar_lea.sflag [#allocation5], %s991
          %s993 = sand.u32 %s284, 1
          %s994 = smul.addr %s993, 16
          %s995 = scalar_lea.vmem [#allocation8], %s994
          %996 = dma.done %s992, 256
        $region80: #{tpu_custom_call.1} parent=75 // pred_fallthru
          _
      $region76: #{tpu_custom_call.1} parent=5 // pred_fallthru
        _
    $region6: #{tpu_custom_call.1} parent=1 // loop_footer
      %s28 = sadd.s32 1, %s24
    $region7: #{tpu_custom_call.1} parent=1 // loop_footer_branch
      %23 = sbr.rel target = $region3
    $region8: #{tpu_custom_call.1} parent=1 // loop_exit
      _
    %997 = vsyncpa [#allocation4], 1
    %s998 = scalar_lea.sflag [#allocation4], 1
    %999 = vsyncpa %s998, 1
    %1000 = vsyncpa [#allocation7], 1
    %s1001 = scalar_lea.sflag [#allocation7], 1
    %1002 = vsyncpa %s1001, 1
    %1003 = vsyncpa [#allocation5], 1
    %s1004 = scalar_lea.sflag [#allocation5], 1
    %1005 = vsyncpa %s1004, 1

</llo_original>
